<compile_context>
chip_gen: v6e
topology: v6e:2x2x1
jax: 0.10.0
libtpu: 0.0.40
codegen_flags: <defaults>
</compile_context>

<pallas_src>
import functools
import math

import jax
import jax.numpy as jnp
import numpy as np
from jax.experimental import pallas as pl
from jax.experimental.pallas import tpu as pltpu

LEAKY_RELU_ALPHA = 0.2
NEG_INF = -1e30


def _round_up(x, m):
    return ((x + m - 1) // m) * m


def _pick_tile(pad_n, cap):
    """Largest multiple of 128 that divides pad_n and is <= cap."""
    t = min(cap, pad_n)
    while pad_n % t != 0:
        t -= 128
    return t


# ---------------------------------------------------------------------------
# Kernel 1: packed projection  (x @ [W|R], block-diag score matmul)
# ---------------------------------------------------------------------------
def _proj_kernel(x_ref, wr_ref, alr_ref, hall_ref, sc_ref, resid_ref, *, hd):
    """x_ref:     (tp, Din)       node-feature row tile
       wr_ref:    (Din, 2*H*D)    [W | R]   (R = residual proj or stacked identity)
       alr_ref:   (H*D, 2*H)      [blockdiag(A_left) | blockdiag(A_right)]
       hall_ref:  (tp, H*D)       projected per-head features (packed)
       sc_ref:    (tp, 2*H)       [source scores | target scores], all heads
       resid_ref: (tp, H*D)       per-head residual term
    """
    xb = x_ref[...].astype(jnp.bfloat16)
    hw = jnp.dot(xb, wr_ref[...].astype(jnp.bfloat16),
                 preferred_element_type=jnp.float32)            # (tp, 2*H*D)
    h_all = hw[:, :hd]
    hall_ref[...] = h_all
    resid_ref[...] = hw[:, hd:]
    sc_ref[...] = jnp.dot(h_all.astype(jnp.bfloat16),
                          alr_ref[...].astype(jnp.bfloat16),
                          preferred_element_type=jnp.float32)   # (tp, 2*H)


# ---------------------------------------------------------------------------
# Kernel 2: flash-style masked softmax + neighborhood aggregation
# ---------------------------------------------------------------------------
def _attn_kernel(hs_ref, htt_ref, hf_ref, resid_ref, bias_ref, out_ref,
                 m_ref, l_ref, acc_ref, *, heads, out_dim, concat_last,
                 nonlinearity):
    """hs_ref:   (tq, H)     per-head source scores for this row tile
       htt_ref:  (H, tk)     per-head target scores (lane-oriented)
       hf_ref:   (tk, H*D)   projected target features
       resid_ref:(tq, H*D)   residual term for this row tile
       bias_ref: (tq, tk)    additive mask (0 on edges, -1e30 otherwise), bf16
       out_ref:  (tq, padF)  lane-dense (128-aligned) output slab
       m/l/acc:  online-softmax scratch (persist across the target-tile axis)
    """
    j = pl.program_id(1)

    @pl.when(j == 0)
    def _():
        m_ref[...] = jnp.full_like(m_ref, NEG_INF)
        l_ref[...] = jnp.zeros_like(l_ref)
        acc_ref[...] = jnp.zeros_like(acc_ref)

    hs = hs_ref[...]                                  # (tq, H)
    htt = htt_ref[...]                                # (H, tk)
    bias = bias_ref[...].astype(jnp.float32)          # (tq, tk)  cast once/tile
    hf = hf_ref[...].astype(jnp.bfloat16)             # (tk, H*D)

    # Only one (tq, tk) score tile is ever live (no per-head score lists).
    for h in range(heads):
        s = hs[:, h:h + 1] + htt[h:h + 1, :]          # (tq, tk)
        s = jnp.where(s >= 0.0, s, LEAKY_RELU_ALPHA * s)   # LeakyReLU(0.2)
        s = s + bias                                  # kill non-edges
        m_prev = m_ref[:, h:h + 1]
        m_new = jnp.maximum(m_prev, jnp.max(s, axis=1, keepdims=True))
        alpha = jnp.exp(m_prev - m_new)
        p = jnp.exp(s - m_new)                        # (tq, tk) f32
        l_ref[:, h:h + 1] = (alpha * l_ref[:, h:h + 1]
                             + jnp.sum(p, axis=1, keepdims=True))
        d0 = h * out_dim
        pv = jnp.dot(p.astype(jnp.bfloat16), hf[:, d0:d0 + out_dim],
                     preferred_element_type=jnp.float32)       # (tq, D)
        acc_ref[:, d0:d0 + out_dim] = alpha * acc_ref[:, d0:d0 + out_dim] + pv
        m_ref[:, h:h + 1] = m_new

    @pl.when(j == pl.num_programs(1) - 1)
    def _():
        m = m_ref[...]                                # (tq, H)
        l = l_ref[...]
        # Rows with no out-edges get zero attention (matches scatter-add ref).
        inv = jnp.where(m > -1e20,
                        pl.reciprocal(l + 1e-8, approx=True), 0.0)
        acc = acc_ref[...]                            # (tq, H*D)
        resid = resid_ref[...]                        # (tq, H*D)
        parts = []
        for h in range(heads):
            d0 = h * out_dim
            parts.append(acc[:, d0:d0 + out_dim] * inv[:, h:h + 1]
                         + resid[:, d0:d0 + out_dim])
        if concat_last:
            res = jnp.concatenate(parts, axis=1)      # (tq, H*D), already packed
        else:
            res = parts[0]
            for q in parts[1:]:
                res = res + q
            res = res * (1.0 / float(heads))          # mean over heads
        if nonlinearity == "elu":
            res = jnp.where(res > 0.0, res, jnp.expm1(res))
        # Lane-dense (unmasked) store: pad to the 128-aligned output width.
        pad_cols = out_ref.shape[1] - res.shape[1]
        if pad_cols > 0:
            res = jnp.concatenate(
                [res, jnp.zeros((res.shape[0], pad_cols), res.dtype)], axis=1)
        out_ref[...] = res.astype(out_ref.dtype)


# ---------------------------------------------------------------------------
# Per-layer wrapper: two pallas_calls
# ---------------------------------------------------------------------------
def _gat_layer(x_p, bias, p, cfg, pad_n):
    heads, out_dim = cfg["heads"], cfg["out_dim"]
    hd = heads * out_dim
    din = x_p.shape[1]

    tp = _pick_tile(pad_n, 256)
    h_all, scores, resid = pl.pallas_call(
        functools.partial(_proj_kernel, hd=hd),
        grid=(pad_n // tp,),
        in_specs=[
            pl.BlockSpec((tp, din), lambda i: (i, 0)),
            pl.BlockSpec((din, 2 * hd), lambda i: (0, 0)),
            pl.BlockSpec((hd, 2 * heads), lambda i: (0, 0)),
        ],
        out_specs=(
            pl.BlockSpec((tp, hd), lambda i: (i, 0)),
            pl.BlockSpec((tp, 2 * heads), lambda i: (i, 0)),
            pl.BlockSpec((tp, hd), lambda i: (i, 0)),
        ),
        out_shape=(
            jax.ShapeDtypeStruct((pad_n, hd), jnp.float32),
            jax.ShapeDtypeStruct((pad_n, 2 * heads), jnp.float32),
            jax.ShapeDtypeStruct((pad_n, hd), jnp.float32),
        ),
        compiler_params=pltpu.CompilerParams(dimension_semantics=("parallel",)),
    )(x_p, p["WR"], p["ALR"])

    hs = scores[:, :heads]                 # (padN, H) source scores
    ht_t = scores[:, heads:].T             # (H, padN) target scores, lane-major

    tq = _pick_tile(pad_n, 256)
    tk = _pick_tile(pad_n, 512)
    out_feat = hd if cfg["concat_last"] else out_dim
    pad_f = _round_up(max(out_feat, 128), 128)

    out_p = pl.pallas_call(
        functools.partial(_attn_kernel, heads=heads, out_dim=out_dim,
                          concat_last=cfg["concat_last"],
                          nonlinearity=cfg["nonlinearity"]),
        grid=(pad_n // tq, pad_n // tk),
        in_specs=[
            pl.BlockSpec((tq, heads), lambda i, j: (i, 0)),   # hs
            pl.BlockSpec((heads, tk), lambda i, j: (0, j)),   # ht (transposed)
            pl.BlockSpec((tk, hd), lambda i, j: (j, 0)),      # target features
            pl.BlockSpec((tq, hd), lambda i, j: (i, 0)),      # residual
            pl.BlockSpec((tq, tk), lambda i, j: (i, j)),      # additive bias
        ],
        out_specs=pl.BlockSpec((tq, pad_f), lambda i, j: (i, 0)),
        out_shape=jax.ShapeDtypeStruct((pad_n, pad_f), jnp.float32),
        scratch_shapes=[
            pltpu.VMEM((tq, heads), jnp.float32),   # running max m
            pltpu.VMEM((tq, heads), jnp.float32),   # running sum l
            pltpu.VMEM((tq, hd), jnp.float32),      # weighted accumulator
        ],
        compiler_params=pltpu.CompilerParams(
            dimension_semantics=("parallel", "arbitrary")),
    )(hs, ht_t, h_all, resid, bias)

    return out_p[:, :out_feat]


# ---------------------------------------------------------------------------
# GAT construction / parameter prep (glue — plain JAX)
# ---------------------------------------------------------------------------
def _kaiming_normal(key, shape, a=LEAKY_RELU_ALPHA):
    fan_in = shape[0]
    gain = math.sqrt(2.0 / (1.0 + a * a))
    std = gain / math.sqrt(fan_in)
    return std * jax.random.normal(key, shape, jnp.float32)


def build_gat(key, input_dim, heads_per_layer, features_per_layer):
    """Mirrors GAT.__init__ layer configuration; packs params for the kernels."""
    n_layers = len(heads_per_layer)
    cfgs, params = [], []
    in_dim = input_dim
    for i in range(n_layers):
        heads = heads_per_layer[i]
        out_dim = features_per_layer[i]
        concat_last = (n_layers > 1) if i == 0 else (i < n_layers - 1)
        nonlin = "identity" if (n_layers == 1 or i == n_layers - 1) else "elu"

        key, kw, kl, kr, kp = jax.random.split(key, 5)
        W = _kaiming_normal(kw, (in_dim, heads * out_dim))
        A_l = _kaiming_normal(kl, (heads, out_dim))
        A_r = _kaiming_normal(kr, (heads, out_dim))
        if out_dim != in_dim:
            R = _kaiming_normal(kp, (in_dim, heads * out_dim))  # learned proj
        else:
            # identity residual: x is added to every head -> stacked identities
            R = jnp.tile(jnp.eye(in_dim, dtype=jnp.float32), (1, heads))

        # Packed parameters (single lane-dense MXU ops inside the kernels).
        WR = jnp.concatenate([W, R], axis=1)                    # (Din, 2*H*D)
        al_blk = jnp.zeros((heads * out_dim, heads), jnp.float32)
        ar_blk = jnp.zeros((heads * out_dim, heads), jnp.float32)
        for h in range(heads):
            al_blk = al_blk.at[h * out_dim:(h + 1) * out_dim, h].set(A_l[h])
            ar_blk = ar_blk.at[h * out_dim:(h + 1) * out_dim, h].set(A_r[h])
        ALR = jnp.concatenate([al_blk, ar_blk], axis=1)          # (H*D, 2*H)

        cfgs.append(dict(in_dim=in_dim, heads=heads, out_dim=out_dim,
                         concat_last=concat_last, nonlinearity=nonlin))
        params.append(dict(WR=WR, ALR=ALR))
        in_dim = heads * out_dim if concat_last else out_dim
    return cfgs, params


def gat_forward(cfgs, params, x, edge_index):
    N = x.shape[0]
    pad_n = _round_up(max(N, 128), 128)
    src, tgt = edge_index[0], edge_index[1]
    # Additive attention bias built ONCE and reused by every layer (bf16).
    adj = jnp.zeros((pad_n, pad_n), jnp.float32).at[src, tgt].set(1.0)
    bias = jnp.where(adj > 0.0, 0.0, NEG_INF).astype(jnp.bfloat16)

    out = jnp.zeros((pad_n, x.shape[1]), x.dtype).at[:N].set(x)
    for cfg, p in zip(cfgs, params):
        out = _gat_layer(out, bias, p, cfg, pad_n)
    return out[:N]


# ---------------------------------------------------------------------------
# Pure-JAX reference (same math + same MXU precision policy) for validation
# ---------------------------------------------------------------------------
def gat_reference(cfgs, params, x, edge_index):
    N = x.shape[0]
    src, tgt = edge_index[0], edge_index[1]
    mask = jnp.zeros((N, N), jnp.float32).at[src, tgt].set(1.0)
    out = x
    for cfg, p in zip(cfgs, params):
        H, D = cfg["heads"], cfg["out_dim"]
        hd = H * D
        xb = out.astype(jnp.bfloat16)
        hw = jnp.dot(xb, p["WR"].astype(jnp.bfloat16),
                     preferred_element_type=jnp.float32)
        h_all, resid = hw[:, :hd], hw[:, hd:]
        sc = jnp.dot(h_all.astype(jnp.bfloat16), p["ALR"].astype(jnp.bfloat16),
                     preferred_element_type=jnp.float32)
        hs, ht = sc[:, :H], sc[:, H:]
        parts = []
        for h in range(H):
            s = hs[:, h:h + 1] + ht[:, h][None, :]
            s = jnp.where(s >= 0.0, s, LEAKY_RELU_ALPHA * s)
            s = jnp.where(mask > 0.0, s, NEG_INF)
            m = jnp.max(s, axis=1, keepdims=True)
            pexp = jnp.exp(s - m)
            denom = jnp.sum(pexp, axis=1, keepdims=True) + 1e-8
            agg = jnp.dot(pexp.astype(jnp.bfloat16),
                          h_all[:, h * D:(h + 1) * D].astype(jnp.bfloat16),
                          preferred_element_type=jnp.float32) / denom
            parts.append(agg + resid[:, h * D:(h + 1) * D])
        if cfg["concat_last"]:
            res = jnp.concatenate(parts, axis=1)
        else:
            res = jnp.mean(jnp.stack(parts, axis=0), axis=0)
        if cfg["nonlinearity"] == "elu":
            res = jnp.where(res > 0.0, res, jnp.expm1(res))
        out = res
    return out


# ---------------------------------------------------------------------------
if __name__ == "__main__":
    key = jax.random.PRNGKey(0)

    N = 16
    input_dim = 8
    heads_per_layer = [4, 2]
    features_per_layer = [8, 6]   # layer0: identity residual; layer1: projected

    key, kx = jax.random.split(key)
    x = jax.random.normal(kx, (N, input_dim), jnp.float32)

    # deterministic edge list (self-loops + ring neighbors), unique edges
    src, tgt = [], []
    for s in range(N):
        for off in (0, 1, 3, 7):
            src.append(s)
            tgt.append((s + off) % N)
    edge_index = jnp.array([src, tgt], dtype=jnp.int32)   # (2, 64)

    cfgs, params = build_gat(key, input_dim, heads_per_layer, features_per_layer)

    out = gat_forward(cfgs, params, x, edge_index)         # (N, 6)
    jax.block_until_ready(out)
    assert out.shape == (N, features_per_layer[-1])
    assert bool(jnp.all(jnp.isfinite(out)))

    ref = gat_reference(cfgs, params, x, edge_index)
    np.testing.assert_allclose(np.asarray(out), np.asarray(ref),
                               rtol=2e-2, atol=2e-2)
    print("KERNEL_OK")
</pallas_src>

<mosaic_0001>
module attributes {stable_mosaic.version = 11 : i64} {
  func.func @_proj_kernel(%arg0: i32, %arg1: memref<128x8xf32, #tpu.memory_space<vmem>>, %arg2: memref<8x64xf32, #tpu.memory_space<vmem>>, %arg3: memref<32x8xf32, #tpu.memory_space<vmem>>, %arg4: memref<128x32xf32, #tpu.memory_space<vmem>>, %arg5: memref<128x8xf32, #tpu.memory_space<vmem>>, %arg6: memref<128x32xf32, #tpu.memory_space<vmem>>) attributes {dimension_semantics = [#tpu.dimension_semantics<parallel>], iteration_bounds = array<i64: 1>, scalar_prefetch = 0 : i64, scratch_operands = 0 : i64, tpu.core_type = #tpu.core_type<tc>, window_params = [{transform_indices = @transform_0, window_bounds = array<i64: 128, 8>}, {pipeline_mode = #tpu.pipeline_mode<synchronous>, transform_indices = @transform_1, window_bounds = array<i64: 8, 64>}, {pipeline_mode = #tpu.pipeline_mode<synchronous>, transform_indices = @transform_2, window_bounds = array<i64: 32, 8>}, {transform_indices = @transform_3, window_bounds = array<i64: 128, 32>}, {transform_indices = @transform_4, window_bounds = array<i64: 128, 8>}, {transform_indices = @transform_5, window_bounds = array<i64: 128, 32>}]} {
    %c0 = arith.constant 0 : index
    %c0_0 = arith.constant 0 : index
    %0 = vector.load %arg1[%c0, %c0_0] : memref<128x8xf32, #tpu.memory_space<vmem>>, vector<128x8xf32>
    %1 = arith.truncf %0 : vector<128x8xf32> to vector<128x8xbf16>
    %c0_1 = arith.constant 0 : index
    %c0_2 = arith.constant 0 : index
    %2 = vector.load %arg2[%c0_1, %c0_2] : memref<8x64xf32, #tpu.memory_space<vmem>>, vector<8x64xf32>
    %3 = arith.truncf %2 : vector<8x64xf32> to vector<8x64xbf16>
    %cst = arith.constant dense<0.000000e+00> : vector<128x64xf32>
    %4 = tpu.matmul %1, %3, %cst {dimension_numbers = #tpu.dot_dimension_numbers<[1], [0], [0], [1], [0, 0, 1, 1], [], []>} : vector<128x8xbf16>, vector<8x64xbf16>, vector<128x64xf32> -> vector<128x64xf32>
    %5 = vector.extract_strided_slice %4 {offsets = [0, 0], sizes = [128, 32], strides = [1, 1]} : vector<128x64xf32> to vector<128x32xf32>
    %c0_3 = arith.constant 0 : index
    %c0_4 = arith.constant 0 : index
    %6 = vector.load %arg4[%c0_3, %c0_4] : memref<128x32xf32, #tpu.memory_space<vmem>>, vector<128x32xf32>
    tpu.vector_store %arg4[%c0_3, %c0_4], %5 {strides = array<i32>} : memref<128x32xf32, #tpu.memory_space<vmem>>, vector<128x32xf32>,
    %7 = vector.extract_strided_slice %4 {offsets = [0, 32], sizes = [128, 32], strides = [1, 1]} : vector<128x64xf32> to vector<128x32xf32>
    %c0_5 = arith.constant 0 : index
    %c0_6 = arith.constant 0 : index
    %8 = vector.load %arg6[%c0_5, %c0_6] : memref<128x32xf32, #tpu.memory_space<vmem>>, vector<128x32xf32>
    tpu.vector_store %arg6[%c0_5, %c0_6], %7 {strides = array<i32>} : memref<128x32xf32, #tpu.memory_space<vmem>>, vector<128x32xf32>,
    %9 = arith.truncf %5 : vector<128x32xf32> to vector<128x32xbf16>
    %c0_7 = arith.constant 0 : index
    %c0_8 = arith.constant 0 : index
    %10 = vector.load %arg3[%c0_7, %c0_8] : memref<32x8xf32, #tpu.memory_space<vmem>>, vector<32x8xf32>
    %11 = arith.truncf %10 : vector<32x8xf32> to vector<32x8xbf16>
    %cst_9 = arith.constant dense<0.000000e+00> : vector<128x8xf32>
    %12 = tpu.matmul %9, %11, %cst_9 {dimension_numbers = #tpu.dot_dimension_numbers<[1], [0], [0], [1], [0, 0, 1, 1], [], []>} : vector<128x32xbf16>, vector<32x8xbf16>, vector<128x8xf32> -> vector<128x8xf32>
    %c0_10 = arith.constant 0 : index
    %c0_11 = arith.constant 0 : index
    %13 = vector.load %arg5[%c0_10, %c0_11] : memref<128x8xf32, #tpu.memory_space<vmem>>, vector<128x8xf32>
    tpu.vector_store %arg5[%c0_10, %c0_11], %12 {strides = array<i32>} : memref<128x8xf32, #tpu.memory_space<vmem>>, vector<128x8xf32>,
    return
  }
  func.func @transform_0(%arg0: i32) -> (i32, i32) {
    %c0_i32 = arith.constant 0 : i32
    %c0_i32_0 = arith.constant 0 : i32
    return %arg0, %c0_i32 : i32, i32
  }
  func.func @transform_1(%arg0: i32) -> (i32, i32) {
    %c0_i32 = arith.constant 0 : i32
    %c0_i32_0 = arith.constant 0 : i32
    %c0_i32_1 = arith.constant 0 : i32
    return %c0_i32, %c0_i32_0 : i32, i32
  }
  func.func @transform_2(%arg0: i32) -> (i32, i32) {
    %c0_i32 = arith.constant 0 : i32
    %c0_i32_0 = arith.constant 0 : i32
    %c0_i32_1 = arith.constant 0 : i32
    return %c0_i32, %c0_i32_0 : i32, i32
  }
  func.func @transform_3(%arg0: i32) -> (i32, i32) {
    %c0_i32 = arith.constant 0 : i32
    %c0_i32_0 = arith.constant 0 : i32
    return %arg0, %c0_i32 : i32, i32
  }
  func.func @transform_4(%arg0: i32) -> (i32, i32) {
    %c0_i32 = arith.constant 0 : i32
    %c0_i32_0 = arith.constant 0 : i32
    return %arg0, %c0_i32 : i32, i32
  }
  func.func @transform_5(%arg0: i32) -> (i32, i32) {
    %c0_i32 = arith.constant 0 : i32
    %c0_i32_0 = arith.constant 0 : i32
    return %arg0, %c0_i32 : i32, i32
  }
}

</mosaic_0001>

<llo_original>
// kernel: tpu_custom_call.1
$region0: #{tpu_custom_call.1}
  #allocation0 [shape = 'u32[]', space=smem, size = 0x4, offset = 0x4, fixed_abs, tag = 'smem constant byte address 0x4 - core index']
  #allocation1 [shape = 'u32[144,128]{1,0:T(1,128)}', space=vmem, size = 0x12000, scoped, tag = 'internal scratch']
  %s0 = inlined_call_operand.vmem [shape: f32[128,8], index: 0, kind: input, shape index: {}]
  %s1 = inlined_call_operand.vmem [shape: f32[8,64], index: 1, kind: input, shape index: {}]
  %s2 = inlined_call_operand.vmem [shape: f32[32,8], index: 2, kind: input, shape index: {}]
  %s3 = inlined_call_operand.vmem [shape: f32[128,32], index: 3, kind: output, shape index: {0}]
  %s4 = inlined_call_operand.vmem [shape: f32[128,8], index: 4, kind: output, shape index: {1}]
  %s5 = inlined_call_operand.vmem [shape: f32[128,32], index: 5, kind: output, shape index: {2}]
  %6 = xla_tuple %s3, %s4, %s5
  %s7 = sld [smem:[#allocation0]]
  $region38: #{tpu_custom_call.1} parent=0
    _
  %s9 = ssub.s32 1, %s7
  %s10 = scalar_select 0, %s9, %s7
  // Predicated region
  $region2: #{tpu_custom_call.1} parent=0 // pred_check
    _
  $region3: #{tpu_custom_call.1} parent=0 // pred_check_branch
    %12 = sbr.rel (0) target = $region5
  $region4: #{tpu_custom_call.1} parent=0 // pred_region
    _
  $region5: #{tpu_custom_call.1} parent=0 // pred_fallthru
    _
  // Predicated region
  $region6: #{tpu_custom_call.1} parent=0 // pred_check
    _
  $region7: #{tpu_custom_call.1} parent=0 // pred_check_branch
    %14 = sbr.rel (0) target = $region9
  $region8: #{tpu_custom_call.1} parent=0 // pred_region
    _
  $region9: #{tpu_custom_call.1} parent=0 // pred_fallthru
    _
  // Predicated region
  $region10: #{tpu_custom_call.1} parent=0 // pred_check
    _
  $region11: #{tpu_custom_call.1} parent=0 // pred_check_branch
    %16 = sbr.rel (0) target = $region13
  $region12: #{tpu_custom_call.1} parent=0 // pred_region
    _
  $region13: #{tpu_custom_call.1} parent=0 // pred_fallthru
    _
  %v18 = vld [vmem:[%s0] sm:$0xff]
  %v19 = vld [vmem:[%s0 + $0x8] sm:$0xff]
  %v20 = vld [vmem:[%s0 + $0x10] sm:$0xff]
  %v21 = vld [vmem:[%s0 + $0x18] sm:$0xff]
  %v22 = vld [vmem:[%s0 + $0x20] sm:$0xff]
  %v23 = vld [vmem:[%s0 + $0x28] sm:$0xff]
  %v24 = vld [vmem:[%s0 + $0x30] sm:$0xff]
  %v25 = vld [vmem:[%s0 + $0x38] sm:$0xff]
  %v26 = vld [vmem:[%s0 + $0x40] sm:$0xff]
  %v27 = vld [vmem:[%s0 + $0x48] sm:$0xff]
  %v28 = vld [vmem:[%s0 + $0x50] sm:$0xff]
  %v29 = vld [vmem:[%s0 + $0x58] sm:$0xff]
  %v30 = vld [vmem:[%s0 + $0x60] sm:$0xff]
  %v31 = vld [vmem:[%s0 + $0x68] sm:$0xff]
  %v32 = vld [vmem:[%s0 + $0x70] sm:$0xff]
  %v33 = vld [vmem:[%s0 + $0x78] sm:$0xff]
  %v34 = vpack.c.bf16 %v19, %v18
  %v35 = vpack.c.bf16 %v21, %v20
  %v36 = vpack.c.bf16 %v23, %v22
  %v37 = vpack.c.bf16 %v25, %v24
  %v38 = vpack.c.bf16 %v27, %v26
  %v39 = vpack.c.bf16 %v29, %v28
  %v40 = vpack.c.bf16 %v31, %v30
  %v41 = vpack.c.bf16 %v33, %v32
  %v42 = vld [vmem:[%s1] sm:$0xff]
  %v43 = vpack.c.bf16 %v42, %v42
  %vm44 = vcmask 64512
  %v46 = vsel %vm44, %v34, 0
  %v49 = vsel %vm44, %v35, 0
  %v52 = vsel %vm44, %v36, 0
  %v55 = vsel %vm44, %v37, 0
  %v58 = vsel %vm44, %v38, 0
  %v61 = vsel %vm44, %v39, 0
  %v64 = vsel %vm44, %v40, 0
  %v67 = vsel %vm44, %v41, 0
  %vm69 = vcmask 1043456
  %v71 = vsel %vm69, %v43, 0
  %73 = vmatprep.subr.bf16.mxu0 0
  %74 = vmatpush1.bf16.msra.mxu0 0
  %75 = vmatprep.subr.bf16.mxu0 0
  %76 = vmatpush1.bf16.msra.mxu0 0
  %77 = vmatprep.subr.bf16.mxu0 0
  %78 = vmatpush1.bf16.msra.mxu0 0
  %79 = vmatprep.subr.bf16.mxu0 0
  %80 = vmatpush1.bf16.msra.mxu0 0
  %81 = vmatprep.subr.bf16.mxu0 0
  %82 = vmatpush1.bf16.msra.mxu0 0
  %83 = vmatprep.subr.bf16.mxu0 0
  %84 = vmatpush1.bf16.msra.mxu0 0
  %85 = vmatprep.subr.bf16.mxu0 0
  %86 = vmatpush1.bf16.msra.mxu0 0
  %87 = vmatprep.subr.bf16.mxu0 0
  %88 = vmatpush1.bf16.msra.mxu0 %v71
  %89 = vmatprep.subr.bf16.mxu0 0
  %90 = vmatpush2.bf16.msra.mxu0 0
  %91 = vmatprep.subr.bf16.mxu0 0
  %92 = vmatpush2.bf16.msra.mxu0 0
  %93 = vmatprep.subr.bf16.mxu0 0
  %94 = vmatpush2.bf16.msra.mxu0 0
  %95 = vmatprep.subr.bf16.mxu0 0
  %96 = vmatpush2.bf16.msra.mxu0 0
  %97 = vmatprep.subr.bf16.mxu0 0
  %98 = vmatpush2.bf16.msra.mxu0 0
  %99 = vmatprep.subr.bf16.mxu0 0
  %100 = vmatpush2.bf16.msra.mxu0 0
  %101 = vmatprep.subr.bf16.mxu0 0
  %102 = vmatpush2.bf16.msra.mxu0 0
  %103 = vmatprep.subr.bf16.mxu0 0
  %104 = vmatpush2.bf16.msra.mxu0 0
  %105 = vmatprep.mubr.bf16.mxu0 0
  %106 = vmatmul.mubr.bf16.gmra.mxu0 %v46
  %v107 = vpop.f32.mrf.mxu0
  %v108 = vadd.f32 0.0, %v107
  %v109 = vpop.f32.mrf.mxu0
  %v110 = vpop.f32.mrf.mxu0
  %v111 = vadd.f32 0.0, %v110
  %v112 = vpop.f32.mrf.mxu0
  %113 = vmatprep.mubr.bf16.mxu0 0
  %114 = vmatmul.mubr.bf16.gmra.mxu0 %v49
  %v115 = vpop.f32.mrf.mxu0
  %v116 = vadd.f32 0.0, %v115
  %v117 = vpop.f32.mrf.mxu0
  %v118 = vpop.f32.mrf.mxu0
  %v119 = vadd.f32 0.0, %v118
  %v120 = vpop.f32.mrf.mxu0
  %121 = vmatprep.mubr.bf16.mxu0 0
  %122 = vmatmul.mubr.bf16.gmra.mxu0 %v52
  %v123 = vpop.f32.mrf.mxu0
  %v124 = vadd.f32 0.0, %v123
  %v125 = vpop.f32.mrf.mxu0
  %v126 = vpop.f32.mrf.mxu0
  %v127 = vadd.f32 0.0, %v126
  %v128 = vpop.f32.mrf.mxu0
  %129 = vmatprep.mubr.bf16.mxu0 0
  %130 = vmatmul.mubr.bf16.gmra.mxu0 %v55
  %v131 = vpop.f32.mrf.mxu0
  %v132 = vadd.f32 0.0, %v131
  %v133 = vpop.f32.mrf.mxu0
  %v134 = vpop.f32.mrf.mxu0
  %v135 = vadd.f32 0.0, %v134
  %v136 = vpop.f32.mrf.mxu0
  %137 = vmatprep.mubr.bf16.mxu0 0
  %138 = vmatmul.mubr.bf16.gmra.mxu0 %v58
  %v139 = vpop.f32.mrf.mxu0
  %v140 = vadd.f32 0.0, %v139
  %v141 = vpop.f32.mrf.mxu0
  %v142 = vpop.f32.mrf.mxu0
  %v143 = vadd.f32 0.0, %v142
  %v144 = vpop.f32.mrf.mxu0
  %145 = vmatprep.mubr.bf16.mxu0 0
  %146 = vmatmul.mubr.bf16.gmra.mxu0 %v61
  %v147 = vpop.f32.mrf.mxu0
  %v148 = vadd.f32 0.0, %v147
  %v149 = vpop.f32.mrf.mxu0
  %v150 = vpop.f32.mrf.mxu0
  %v151 = vadd.f32 0.0, %v150
  %v152 = vpop.f32.mrf.mxu0
  %153 = vmatprep.mubr.bf16.mxu0 0
  %154 = vmatmul.mubr.bf16.gmra.mxu0 %v64
  %v155 = vpop.f32.mrf.mxu0
  %v156 = vadd.f32 0.0, %v155
  %v157 = vpop.f32.mrf.mxu0
  %v158 = vpop.f32.mrf.mxu0
  %v159 = vadd.f32 0.0, %v158
  %v160 = vpop.f32.mrf.mxu0
  %161 = vmatprep.mubr.bf16.mxu0 0
  %162 = vmatmul.mubr.bf16.gmra.mxu0 %v67
  %v163 = vpop.f32.mrf.mxu0
  %v164 = vadd.f32 0.0, %v163
  %v165 = vpop.f32.mrf.mxu0
  %v166 = vpop.f32.mrf.mxu0
  %v167 = vadd.f32 0.0, %v166
  %v168 = vpop.f32.mrf.mxu0
  %169 = vdwg.mxu0
  %vm170 = vcmask 261120
  %171 = vst.msk [vmem:[%s3] sm:$0xff] %vm170, %v108
  %172 = vst.msk [vmem:[%s3 + $0x8] sm:$0xff] %vm170, %v111
  %173 = vst.msk [vmem:[%s3 + $0x10] sm:$0xff] %vm170, %v116
  %174 = vst.msk [vmem:[%s3 + $0x18] sm:$0xff] %vm170, %v119
  %175 = vst.msk [vmem:[%s3 + $0x20] sm:$0xff] %vm170, %v124
  %176 = vst.msk [vmem:[%s3 + $0x28] sm:$0xff] %vm170, %v127
  %177 = vst.msk [vmem:[%s3 + $0x30] sm:$0xff] %vm170, %v132
  %178 = vst.msk [vmem:[%s3 + $0x38] sm:$0xff] %vm170, %v135
  %179 = vst.msk [vmem:[%s3 + $0x40] sm:$0xff] %vm170, %v140
  %180 = vst.msk [vmem:[%s3 + $0x48] sm:$0xff] %vm170, %v143
  %181 = vst.msk [vmem:[%s3 + $0x50] sm:$0xff] %vm170, %v148
  %182 = vst.msk [vmem:[%s3 + $0x58] sm:$0xff] %vm170, %v151
  %183 = vst.msk [vmem:[%s3 + $0x60] sm:$0xff] %vm170, %v156
  %184 = vst.msk [vmem:[%s3 + $0x68] sm:$0xff] %vm170, %v159
  %185 = vst.msk [vmem:[%s3 + $0x70] sm:$0xff] %vm170, %v164
  %186 = vst.msk [vmem:[%s3 + $0x78] sm:$0xff] %vm170, %v167
  %203 = vrot.lane.b32.xlu0 %v108, 96
  %v204 = vpop.permute.xlu0 %203
  %205 = vrot.lane.b32.xlu0 %v111, 96
  %v206 = vpop.permute.xlu0 %205
  %207 = vrot.lane.b32.xlu0 %v116, 96
  %v208 = vpop.permute.xlu0 %207
  %209 = vrot.lane.b32.xlu0 %v119, 96
  %v210 = vpop.permute.xlu0 %209
  %211 = vrot.lane.b32.xlu0 %v124, 96
  %v212 = vpop.permute.xlu0 %211
  %213 = vrot.lane.b32.xlu0 %v127, 96
  %v214 = vpop.permute.xlu0 %213
  %215 = vrot.lane.b32.xlu0 %v132, 96
  %v216 = vpop.permute.xlu0 %215
  %217 = vrot.lane.b32.xlu0 %v135, 96
  %v218 = vpop.permute.xlu0 %217
  %219 = vrot.lane.b32.xlu0 %v140, 96
  %v220 = vpop.permute.xlu0 %219
  %221 = vrot.lane.b32.xlu0 %v143, 96
  %v222 = vpop.permute.xlu0 %221
  %223 = vrot.lane.b32.xlu0 %v148, 96
  %v224 = vpop.permute.xlu0 %223
  %225 = vrot.lane.b32.xlu0 %v151, 96
  %v226 = vpop.permute.xlu0 %225
  %227 = vrot.lane.b32.xlu0 %v156, 96
  %v228 = vpop.permute.xlu0 %227
  %229 = vrot.lane.b32.xlu0 %v159, 96
  %v230 = vpop.permute.xlu0 %229
  %231 = vrot.lane.b32.xlu0 %v164, 96
  %v232 = vpop.permute.xlu0 %231
  %233 = vrot.lane.b32.xlu0 %v167, 96
  %v234 = vpop.permute.xlu0 %233
  %251 = vst.msk [vmem:[%s5] sm:$0xff] %vm170, %v204
  %252 = vst.msk [vmem:[%s5 + $0x8] sm:$0xff] %vm170, %v206
  %253 = vst.msk [vmem:[%s5 + $0x10] sm:$0xff] %vm170, %v208
  %254 = vst.msk [vmem:[%s5 + $0x18] sm:$0xff] %vm170, %v210
  %255 = vst.msk [vmem:[%s5 + $0x20] sm:$0xff] %vm170, %v212
  %256 = vst.msk [vmem:[%s5 + $0x28] sm:$0xff] %vm170, %v214
  %257 = vst.msk [vmem:[%s5 + $0x30] sm:$0xff] %vm170, %v216
  %258 = vst.msk [vmem:[%s5 + $0x38] sm:$0xff] %vm170, %v218
  %259 = vst.msk [vmem:[%s5 + $0x40] sm:$0xff] %vm170, %v220
  %260 = vst.msk [vmem:[%s5 + $0x48] sm:$0xff] %vm170, %v222
  %261 = vst.msk [vmem:[%s5 + $0x50] sm:$0xff] %vm170, %v224
  %262 = vst.msk [vmem:[%s5 + $0x58] sm:$0xff] %vm170, %v226
  %263 = vst.msk [vmem:[%s5 + $0x60] sm:$0xff] %vm170, %v228
  %264 = vst.msk [vmem:[%s5 + $0x68] sm:$0xff] %vm170, %v230
  %265 = vst.msk [vmem:[%s5 + $0x70] sm:$0xff] %vm170, %v232
  %266 = vst.msk [vmem:[%s5 + $0x78] sm:$0xff] %vm170, %v234
  %v267 = vpack.c.bf16 %v111, %v108
  %v268 = vpack.c.bf16 %v119, %v116
  %v269 = vpack.c.bf16 %v127, %v124
  %v270 = vpack.c.bf16 %v135, %v132
  %v271 = vpack.c.bf16 %v143, %v140
  %v272 = vpack.c.bf16 %v151, %v148
  %v273 = vpack.c.bf16 %v159, %v156
  %v274 = vpack.c.bf16 %v167, %v164
  %v275 = vld [vmem:[%s2] sm:$0xff]
  %v276 = vld [vmem:[%s2 + $0x8] sm:$0xff]
  %v277 = vld [vmem:[%s2 + $0x10] sm:$0xff]
  %v278 = vld [vmem:[%s2 + $0x18] sm:$0xff]
  %v279 = vpack.c.bf16 %v276, %v275
  %v280 = vpack.c.bf16 %v278, %v277
  %v282 = vsel %vm170, %v267, 0
  %v285 = vsel %vm170, %v268, 0
  %v288 = vsel %vm170, %v269, 0
  %v291 = vsel %vm170, %v270, 0
  %v294 = vsel %vm170, %v271, 0
  %v297 = vsel %vm170, %v272, 0
  %v300 = vsel %vm170, %v273, 0
  %v303 = vsel %vm170, %v274, 0
  %305 = vmatprep.subr.bf16.mxu0 0
  %306 = vmatpush1.bf16.msra.mxu0 0
  %307 = vmatprep.subr.bf16.mxu0 0
  %308 = vmatpush1.bf16.msra.mxu0 0
  %309 = vmatprep.subr.bf16.mxu0 0
  %310 = vmatpush1.bf16.msra.mxu0 0
  %311 = vmatprep.subr.bf16.mxu0 0
  %312 = vmatpush1.bf16.msra.mxu0 0
  %313 = vmatprep.subr.bf16.mxu0 0
  %314 = vmatpush1.bf16.msra.mxu0 0
  %315 = vmatprep.subr.bf16.mxu0 0
  %316 = vmatpush1.bf16.msra.mxu0 0
  %317 = vmatprep.subr.bf16.mxu0 0
  %318 = vmatpush1.bf16.msra.mxu0 %v280
  %319 = vmatprep.subr.bf16.mxu0 0
  %320 = vmatpush1.bf16.msra.mxu0 %v279
  %321 = vmatprep.subr.bf16.mxu0 0
  %322 = vmatpush2.bf16.msra.mxu0 0
  %323 = vmatprep.subr.bf16.mxu0 0
  %324 = vmatpush2.bf16.msra.mxu0 0
  %325 = vmatprep.subr.bf16.mxu0 0
  %326 = vmatpush2.bf16.msra.mxu0 0
  %327 = vmatprep.subr.bf16.mxu0 0
  %328 = vmatpush2.bf16.msra.mxu0 0
  %329 = vmatprep.subr.bf16.mxu0 0
  %330 = vmatpush2.bf16.msra.mxu0 0
  %331 = vmatprep.subr.bf16.mxu0 0
  %332 = vmatpush2.bf16.msra.mxu0 0
  %333 = vmatprep.subr.bf16.mxu0 0
  %334 = vmatpush2.bf16.msra.mxu0 0
  %335 = vmatprep.subr.bf16.mxu0 0
  %336 = vmatpush2.bf16.msra.mxu0 0
  %337 = vmatprep.mubr.bf16.mxu0 0
  %338 = vmatmul.mubr.bf16.gmra.mxu0 %v282
  %v339 = vpop.f32.mrf.mxu0
  %v340 = vadd.f32 0.0, %v339
  %v341 = vpop.f32.mrf.mxu0
  %v342 = vpop.f32.mrf.mxu0
  %v343 = vadd.f32 0.0, %v342
  %v344 = vpop.f32.mrf.mxu0
  %345 = vmatprep.mubr.bf16.mxu0 0
  %346 = vmatmul.mubr.bf16.gmra.mxu0 %v285
  %v347 = vpop.f32.mrf.mxu0
  %v348 = vadd.f32 0.0, %v347
  %v349 = vpop.f32.mrf.mxu0
  %v350 = vpop.f32.mrf.mxu0
  %v351 = vadd.f32 0.0, %v350
  %v352 = vpop.f32.mrf.mxu0
  %353 = vmatprep.mubr.bf16.mxu0 0
  %354 = vmatmul.mubr.bf16.gmra.mxu0 %v288
  %v355 = vpop.f32.mrf.mxu0
  %v356 = vadd.f32 0.0, %v355
  %v357 = vpop.f32.mrf.mxu0
  %v358 = vpop.f32.mrf.mxu0
  %v359 = vadd.f32 0.0, %v358
  %v360 = vpop.f32.mrf.mxu0
  %361 = vmatprep.mubr.bf16.mxu0 0
  %362 = vmatmul.mubr.bf16.gmra.mxu0 %v291
  %v363 = vpop.f32.mrf.mxu0
  %v364 = vadd.f32 0.0, %v363
  %v365 = vpop.f32.mrf.mxu0
  %v366 = vpop.f32.mrf.mxu0
  %v367 = vadd.f32 0.0, %v366
  %v368 = vpop.f32.mrf.mxu0
  %369 = vmatprep.mubr.bf16.mxu0 0
  %370 = vmatmul.mubr.bf16.gmra.mxu0 %v294
  %v371 = vpop.f32.mrf.mxu0
  %v372 = vadd.f32 0.0, %v371
  %v373 = vpop.f32.mrf.mxu0
  %v374 = vpop.f32.mrf.mxu0
  %v375 = vadd.f32 0.0, %v374
  %v376 = vpop.f32.mrf.mxu0
  %377 = vmatprep.mubr.bf16.mxu0 0
  %378 = vmatmul.mubr.bf16.gmra.mxu0 %v297
  %v379 = vpop.f32.mrf.mxu0
  %v380 = vadd.f32 0.0, %v379
  %v381 = vpop.f32.mrf.mxu0
  %v382 = vpop.f32.mrf.mxu0
  %v383 = vadd.f32 0.0, %v382
  %v384 = vpop.f32.mrf.mxu0
  %385 = vmatprep.mubr.bf16.mxu0 0
  %386 = vmatmul.mubr.bf16.gmra.mxu0 %v300
  %v387 = vpop.f32.mrf.mxu0
  %v388 = vadd.f32 0.0, %v387
  %v389 = vpop.f32.mrf.mxu0
  %v390 = vpop.f32.mrf.mxu0
  %v391 = vadd.f32 0.0, %v390
  %v392 = vpop.f32.mrf.mxu0
  %393 = vmatprep.mubr.bf16.mxu0 0
  %394 = vmatmul.mubr.bf16.gmra.mxu0 %v303
  %v395 = vpop.f32.mrf.mxu0
  %v396 = vadd.f32 0.0, %v395
  %v397 = vpop.f32.mrf.mxu0
  %v398 = vpop.f32.mrf.mxu0
  %v399 = vadd.f32 0.0, %v398
  %v400 = vpop.f32.mrf.mxu0
  %401 = vdwg.mxu0
  %402 = vst.msk [vmem:[%s4] sm:$0xff] %vm44, %v340
  %403 = vst.msk [vmem:[%s4 + $0x8] sm:$0xff] %vm44, %v343
  %404 = vst.msk [vmem:[%s4 + $0x10] sm:$0xff] %vm44, %v348
  %405 = vst.msk [vmem:[%s4 + $0x18] sm:$0xff] %vm44, %v351
  %406 = vst.msk [vmem:[%s4 + $0x20] sm:$0xff] %vm44, %v356
  %407 = vst.msk [vmem:[%s4 + $0x28] sm:$0xff] %vm44, %v359
  %408 = vst.msk [vmem:[%s4 + $0x30] sm:$0xff] %vm44, %v364
  %409 = vst.msk [vmem:[%s4 + $0x38] sm:$0xff] %vm44, %v367
  %410 = vst.msk [vmem:[%s4 + $0x40] sm:$0xff] %vm44, %v372
  %411 = vst.msk [vmem:[%s4 + $0x48] sm:$0xff] %vm44, %v375
  %412 = vst.msk [vmem:[%s4 + $0x50] sm:$0xff] %vm44, %v380
  %413 = vst.msk [vmem:[%s4 + $0x58] sm:$0xff] %vm44, %v383
  %414 = vst.msk [vmem:[%s4 + $0x60] sm:$0xff] %vm44, %v388
  %415 = vst.msk [vmem:[%s4 + $0x68] sm:$0xff] %vm44, %v391
  %416 = vst.msk [vmem:[%s4 + $0x70] sm:$0xff] %vm44, %v396
  %417 = vst.msk [vmem:[%s4 + $0x78] sm:$0xff] %vm44, %v399
  // Predicated region
  $region14: #{tpu_custom_call.1} parent=0 // pred_check
    _
  $region15: #{tpu_custom_call.1} parent=0 // pred_check_branch
    %419 = sbr.rel (0) target = $region17
  $region16: #{tpu_custom_call.1} parent=0 // pred_region
    _
  $region17: #{tpu_custom_call.1} parent=0 // pred_fallthru
    _
  // Predicated region
  $region18: #{tpu_custom_call.1} parent=0 // pred_check
    _
  $region19: #{tpu_custom_call.1} parent=0 // pred_check_branch
    %421 = sbr.rel (0) target = $region21
  $region20: #{tpu_custom_call.1} parent=0 // pred_region
    _
  $region21: #{tpu_custom_call.1} parent=0 // pred_fallthru
    _
  // Predicated region
  $region22: #{tpu_custom_call.1} parent=0 // pred_check
    _
  $region23: #{tpu_custom_call.1} parent=0 // pred_check_branch
    %423 = sbr.rel (0) target = $region25
  $region24: #{tpu_custom_call.1} parent=0 // pred_region
    _
  $region25: #{tpu_custom_call.1} parent=0 // pred_fallthru
    _
  // Predicated region
  $region26: #{tpu_custom_call.1} parent=0 // pred_check
    _
  $region27: #{tpu_custom_call.1} parent=0 // pred_check_branch
    %425 = sbr.rel (0) target = $region29
  $region28: #{tpu_custom_call.1} parent=0 // pred_region
    _
  $region29: #{tpu_custom_call.1} parent=0 // pred_fallthru
    _
  // Predicated region
  $region30: #{tpu_custom_call.1} parent=0 // pred_check
    _
  $region31: #{tpu_custom_call.1} parent=0 // pred_check_branch
    %427 = sbr.rel (0) target = $region33
  $region32: #{tpu_custom_call.1} parent=0 // pred_region
    _
  $region33: #{tpu_custom_call.1} parent=0 // pred_fallthru
    _
  // Predicated region
  $region34: #{tpu_custom_call.1} parent=0 // pred_check
    _
  $region35: #{tpu_custom_call.1} parent=0 // pred_check_branch
    %429 = sbr.rel (0) target = $region37
  $region36: #{tpu_custom_call.1} parent=0 // pred_region
    _
  $region37: #{tpu_custom_call.1} parent=0 // pred_fallthru
    _

</llo_original>
